<compile_context>
chip_gen: v7x
topology: tpu7x:2x2x1
jax: 0.10.0
libtpu: 0.0.40
codegen_flags: <defaults>
</compile_context>

<pallas_src>
import functools
import math

import jax
import jax.numpy as jnp
from jax import lax
from jax.experimental import pallas as pl
from jax.experimental.pallas import tpu as pltpu


def _round_up(x, m):
    return ((x + m - 1) // m) * m


def critic_kernel(s_ref, a_ref, w1s_ref, w1a_ref, b1_ref, w2t_ref, b2_ref,
                  w3_ref, b3_ref, q_ref):
    # Per batch tile of TB rows:
    #   s: (TB, Ds)   a: (TB, Da)            (compute dtype: f32 or bf16)
    #   w1s: (Ds, H1) w1a: (Da, H1) b1: (1, H1)  f32 bias
    #   w2t: (H2, H1) b2: (H2, 1)                f32 bias
    #   w3:  (H2, 1)  b3: (1, 1) scalar in SMEM
    #   q:   (1, TB)  lane-dense output row
    cd = w1s_ref.dtype                       # MXU operand dtype (matches s/a)

    # Layer 1 (fused concat): cat([s, a], 1) @ w1 == s @ w1[:Ds] + a @ w1[Ds:]
    h1 = (jnp.dot(s_ref[...], w1s_ref[...], preferred_element_type=jnp.float32)
          + jnp.dot(a_ref[...], w1a_ref[...], preferred_element_type=jnp.float32)
          + b1_ref[...])
    h1 = jnp.maximum(h1, 0.0)                # (TB, H1), f32 on the VPU

    # Layer 2, transposed output (batch along lanes):
    #   h2^T = w2^T @ h1^T  via an NT dot (contract H1 on both operands),
    #   same dimension-number pattern as flash-attention QK^T.
    h2t = lax.dot_general(w2t_ref[...], h1.astype(cd),
                          (((1,), (1,)), ((), ())),
                          preferred_element_type=jnp.float32) + b2_ref[...]
    h2t = jnp.maximum(h2t, 0.0)              # (H2, TB), f32, lane-dense

    # Layer 3 (H2 -> 1): VPU multiply + sublane reduction -> lane-dense (1, TB).
    q = jnp.sum(h2t * w3_ref[...], axis=0, keepdims=True) + b3_ref[0, 0]
    q_ref[...] = q.astype(q_ref.dtype)       # Identity output activation


def prepare_critic_params(params, state_dim, *, use_bf16=False):
    """One-time weight preparation (split / transpose / optional bf16 cast).

    Done OUTSIDE the jitted per-call path so bf16 casts are not re-run every
    forward call.  Works on v5e / v6e / v7x (the MXU takes bf16 on all of them;
    all VPU math in the kernel stays f32).
    """
    w1, b1, w2, b2, w3, b3 = params
    cd = jnp.bfloat16 if use_bf16 else jnp.float32
    w1_s = w1[:state_dim].astype(cd)          # (Ds, H1)
    w1_a = w1[state_dim:].astype(cd)          # (Da, H1)
    b1 = b1.reshape(1, -1).astype(jnp.float32)    # (1, H1)
    w2t = w2.T.astype(cd)                     # (H2, H1)  for the NT layer-2 dot
    b2 = b2.reshape(-1, 1).astype(jnp.float32)    # (H2, 1)  column bias
    w3 = w3.reshape(-1, 1).astype(jnp.float32)    # (H2, 1)  column for sublane reduce
    b3 = b3.reshape(1, 1).astype(jnp.float32)     # (1, 1)   SMEM scalar
    return (w1_s, w1_a, b1, w2t, b2, w3, b3)


@functools.partial(jax.jit, static_argnames=("block_b",))
def critic_forward(s, a, prepared, *, block_b=4096):
    """Pallas implementation of Critic.forward(s, a).  Returns (B, 1) f32."""
    w1_s, w1_a, b1, w2t, b2, w3, b3 = prepared
    B, Ds = s.shape
    Da = a.shape[1]
    H1 = w1_s.shape[1]
    H2 = w2t.shape[0]
    cd = w1_s.dtype                            # compute / streaming dtype

    # Stream activations in the compute dtype (bf16 halves HBM read bytes and
    # the batch-tile double-buffer VMEM; removes in-kernel casts).
    s = s.astype(cd)
    a = a.astype(cd)

    # Batch tile: as large as possible (amortize ~0.35us/step), but capped so
    # a large batch always yields >= 2 grid steps ("parallel" axis -> both
    # TensorCores on v7x).  TB is either == B or a multiple of 128, which keeps
    # every BlockSpec (including the lane-dense (1, TB) output) legal.
    tb_target = min(block_b, max(128, _round_up(pl.cdiv(B, 2), 128)))
    TB = B if B <= tb_target else tb_target
    grid = (pl.cdiv(B, TB),)

    batch_spec = lambda d: pl.BlockSpec((TB, d), lambda i: (i, 0))
    const_spec = lambda r, c: pl.BlockSpec((r, c), lambda i: (0, 0))

    # VMEM budget from actual buffer sizes (headroom x3), capped for v7x.
    bpe = jnp.dtype(cd).itemsize
    est = (2 * TB * (Ds + Da) * bpe            # double-buffered s/a tiles
           + 2 * TB * 4                        # double-buffered q tile
           + ((Ds + Da) * H1 + H2 * H1) * bpe  # resident weights
           + (H1 + 2 * H2 + 1) * 4             # resident biases / w3
           + TB * (128 + max(H2, 8)) * 4)      # h1 / h2^T intermediates (lane-padded)
    vmem_limit = int(max(32 * 1024 * 1024, min(3 * est, 64 * 1024 * 1024)))

    q_row = pl.pallas_call(
        critic_kernel,
        out_shape=jax.ShapeDtypeStruct((1, B), jnp.float32),
        grid=grid,
        in_specs=[
            batch_spec(Ds),                    # s    (tiled over batch)
            batch_spec(Da),                    # a    (tiled over batch)
            const_spec(Ds, H1),                # w1_s (VMEM-resident)
            const_spec(Da, H1),                # w1_a
            const_spec(1, H1),                 # b1
            const_spec(H2, H1),                # w2^T
            const_spec(H2, 1),                 # b2 column
            const_spec(H2, 1),                 # w3 column
            pl.BlockSpec((1, 1), lambda i: (0, 0),
                         memory_space=pltpu.MemorySpace.SMEM),  # b3 scalar
        ],
        out_specs=pl.BlockSpec((1, TB), lambda i: (0, i)),      # lane-dense q row
        compiler_params=pltpu.CompilerParams(
            dimension_semantics=("parallel",),                  # 2 TCs on v7x
            vmem_limit_bytes=vmem_limit,
        ),
    )(s, a, w1_s, w1_a, b1, w2t, b2, w3, b3)

    return q_row.reshape(B, 1)                 # free reshape to the PyTorch shape


def init_critic_params(key, input_size, hidden_sizes):
    """Deterministic init matching nn.Linear default (U(-1/sqrt(fan_in), +1/sqrt(fan_in)))."""
    sizes = [input_size] + list(hidden_sizes) + [1]
    params = []
    for i in range(len(sizes) - 1):
        fan_in, fan_out = sizes[i], sizes[i + 1]
        key, kw, kb = jax.random.split(key, 3)
        bound = 1.0 / math.sqrt(fan_in)
        w = jax.random.uniform(kw, (fan_in, fan_out), jnp.float32, -bound, bound)
        b = jax.random.uniform(kb, (1, fan_out), jnp.float32, -bound, bound)
        params += [w, b]
    return tuple(params)


def critic_reference(s, a, params):
    """Plain-JAX reference for validation."""
    x = jnp.concatenate([s, a], axis=1)
    w1, b1, w2, b2, w3, b3 = params
    h1 = jnp.maximum(x @ w1 + b1, 0.0)
    h2 = jnp.maximum(h1 @ w2 + b2, 0.0)
    return h2 @ w3 + b3


if __name__ == "__main__":
    key = jax.random.PRNGKey(0)
    k_s, k_a, k_p, k_s2, k_a2 = jax.random.split(key, 5)

    batch = 8
    state_dim = 12
    action_dim = 4
    input_size = state_dim + action_dim        # Critic input = cat([s, a], dim=1)
    hidden_sizes = (32, 32)

    s = jax.random.normal(k_s, (batch, state_dim), jnp.float32)
    a = jax.random.normal(k_a, (batch, action_dim), jnp.float32)
    params = init_critic_params(k_p, input_size, hidden_sizes)
    q_ref = critic_reference(s, a, params)

    # fp32 path: must match the reference tightly.
    prep_f32 = prepare_critic_params(params, state_dim, use_bf16=False)
    q = critic_forward(s, a, prep_f32)
    jax.block_until_ready(q)
    assert q.shape == (batch, 1)
    assert jnp.allclose(q, q_ref, atol=1e-4, rtol=1e-4), "fp32 mismatch vs reference"

    # bf16 streaming + bf16 MXU operands (valid on v5e/v6e/v7x): looser tolerance.
    prep_bf16 = prepare_critic_params(params, state_dim, use_bf16=True)
    q_bf16 = critic_forward(s, a, prep_bf16)
    jax.block_until_ready(q_bf16)
    assert q_bf16.shape == (batch, 1)
    assert jnp.allclose(q_bf16, q_ref, atol=5e-2, rtol=5e-2), "bf16 mismatch vs reference"

    # Ragged / multi-step batch: grid > 1, partial tail block, masked lane-dense writeback.
    batch2 = 200
    s2 = jax.random.normal(k_s2, (batch2, state_dim), jnp.float32)
    a2 = jax.random.normal(k_a2, (batch2, action_dim), jnp.float32)
    q2 = critic_forward(s2, a2, prep_f32)
    jax.block_until_ready(q2)
    q2_ref = critic_reference(s2, a2, params)
    assert q2.shape == (batch2, 1)
    assert jnp.allclose(q2, q2_ref, atol=1e-4, rtol=1e-4), "ragged-batch mismatch vs reference"

    print("KERNEL_OK")
</pallas_src>

<mosaic_0001>
module attributes {stable_mosaic.version = 11 : i64} {
  func.func @critic_kernel(%arg0: i32, %arg1: memref<8x12xf32, #tpu.memory_space<vmem>>, %arg2: memref<8x4xf32, #tpu.memory_space<vmem>>, %arg3: memref<12x32xf32, #tpu.memory_space<vmem>>, %arg4: memref<4x32xf32, #tpu.memory_space<vmem>>, %arg5: memref<1x32xf32, #tpu.memory_space<vmem>>, %arg6: memref<32x32xf32, #tpu.memory_space<vmem>>, %arg7: memref<32x1xf32, #tpu.memory_space<vmem>>, %arg8: memref<32x1xf32, #tpu.memory_space<vmem>>, %arg9: memref<1x1xf32, #tpu.memory_space<smem>>, %arg10: memref<1x8xf32, #tpu.memory_space<vmem>>) attributes {dimension_semantics = [#tpu.dimension_semantics<parallel>], iteration_bounds = array<i64: 1>, scalar_prefetch = 0 : i64, scratch_operands = 0 : i64, tpu.core_type = #tpu.core_type<tc>, window_params = [{transform_indices = @transform_0, window_bounds = array<i64: 8, 12>}, {transform_indices = @transform_1, window_bounds = array<i64: 8, 4>}, {pipeline_mode = #tpu.pipeline_mode<synchronous>, transform_indices = @transform_2, window_bounds = array<i64: 12, 32>}, {pipeline_mode = #tpu.pipeline_mode<synchronous>, transform_indices = @transform_3, window_bounds = array<i64: 4, 32>}, {pipeline_mode = #tpu.pipeline_mode<synchronous>, transform_indices = @transform_4, window_bounds = array<i64: 1, 32>}, {pipeline_mode = #tpu.pipeline_mode<synchronous>, transform_indices = @transform_5, window_bounds = array<i64: 32, 32>}, {pipeline_mode = #tpu.pipeline_mode<synchronous>, transform_indices = @transform_6, window_bounds = array<i64: 32, 1>}, {pipeline_mode = #tpu.pipeline_mode<synchronous>, transform_indices = @transform_7, window_bounds = array<i64: 32, 1>}, {transform_indices = @transform_8, window_bounds = array<i64: 1, 1>}, {transform_indices = @transform_9, window_bounds = array<i64: 1, 8>}]} {
    %c0 = arith.constant 0 : index
    %c0_0 = arith.constant 0 : index
    %0 = vector.load %arg1[%c0, %c0_0] : memref<8x12xf32, #tpu.memory_space<vmem>>, vector<8x12xf32>
    %c0_1 = arith.constant 0 : index
    %c0_2 = arith.constant 0 : index
    %1 = vector.load %arg3[%c0_1, %c0_2] : memref<12x32xf32, #tpu.memory_space<vmem>>, vector<12x32xf32>
    %cst = arith.constant dense<0.000000e+00> : vector<8x32xf32>
    %2 = tpu.matmul %0, %1, %cst {dimension_numbers = #tpu.dot_dimension_numbers<[1], [0], [0], [1], [0, 0, 1, 1], [], []>} : vector<8x12xf32>, vector<12x32xf32>, vector<8x32xf32> -> vector<8x32xf32>
    %c0_3 = arith.constant 0 : index
    %c0_4 = arith.constant 0 : index
    %3 = vector.load %arg2[%c0_3, %c0_4] : memref<8x4xf32, #tpu.memory_space<vmem>>, vector<8x4xf32>
    %c0_5 = arith.constant 0 : index
    %c0_6 = arith.constant 0 : index
    %4 = vector.load %arg4[%c0_5, %c0_6] : memref<4x32xf32, #tpu.memory_space<vmem>>, vector<4x32xf32>
    %cst_7 = arith.constant dense<0.000000e+00> : vector<8x32xf32>
    %5 = tpu.matmul %3, %4, %cst_7 {dimension_numbers = #tpu.dot_dimension_numbers<[1], [0], [0], [1], [0, 0, 1, 1], [], []>} : vector<8x4xf32>, vector<4x32xf32>, vector<8x32xf32> -> vector<8x32xf32>
    %6 = arith.addf %2, %5 : vector<8x32xf32>
    %c0_8 = arith.constant 0 : index
    %c0_9 = arith.constant 0 : index
    %7 = vector.load %arg5[%c0_8, %c0_9] : memref<1x32xf32, #tpu.memory_space<vmem>>, vector<1x32xf32>
    %8 = vector.broadcast %7 : vector<1x32xf32> to vector<8x32xf32>
    %9 = arith.addf %6, %8 : vector<8x32xf32>
    %cst_10 = arith.constant 0.000000e+00 : f32
    %10 = vector.broadcast %cst_10 : f32 to vector<8x32xf32>
    %11 = arith.maximumf %9, %10 : vector<8x32xf32>
    %c0_11 = arith.constant 0 : index
    %c0_12 = arith.constant 0 : index
    %12 = vector.load %arg6[%c0_11, %c0_12] : memref<32x32xf32, #tpu.memory_space<vmem>>, vector<32x32xf32>
    %cst_13 = arith.constant dense<0.000000e+00> : vector<32x8xf32>
    %13 = tpu.matmul %12, %11, %cst_13 {dimension_numbers = #tpu.dot_dimension_numbers<[1], [1], [0], [0], [0, 0, 1, 0], [], []>} : vector<32x32xf32>, vector<8x32xf32>, vector<32x8xf32> -> vector<32x8xf32>
    %c0_14 = arith.constant 0 : index
    %c0_15 = arith.constant 0 : index
    %14 = vector.load %arg7[%c0_14, %c0_15] : memref<32x1xf32, #tpu.memory_space<vmem>>, vector<32x1xf32>
    %15 = vector.broadcast %14 : vector<32x1xf32> to vector<32x8xf32>
    %16 = arith.addf %13, %15 : vector<32x8xf32>
    %cst_16 = arith.constant 0.000000e+00 : f32
    %17 = vector.broadcast %cst_16 : f32 to vector<32x8xf32>
    %18 = arith.maximumf %16, %17 : vector<32x8xf32>
    %c0_17 = arith.constant 0 : index
    %c0_18 = arith.constant 0 : index
    %19 = vector.load %arg8[%c0_17, %c0_18] : memref<32x1xf32, #tpu.memory_space<vmem>>, vector<32x1xf32>
    %20 = vector.broadcast %19 : vector<32x1xf32> to vector<32x8xf32>
    %21 = arith.mulf %18, %20 : vector<32x8xf32>
    %cst_19 = arith.constant dense<0.000000e+00> : vector<8xf32>
    %22 = vector.multi_reduction <add>, %21, %cst_19 [0] : vector<32x8xf32> to vector<8xf32>
    %23 = vector.shape_cast %22 : vector<8xf32> to vector<1x8xf32>
    %c0_20 = arith.constant 0 : index
    %c0_21 = arith.constant 0 : index
    %24 = memref.load %arg9[%c0_20, %c0_21] : memref<1x1xf32, #tpu.memory_space<smem>>
    %25 = vector.broadcast %24 : f32 to vector<1x8xf32>
    %26 = arith.addf %23, %25 : vector<1x8xf32>
    %c0_22 = arith.constant 0 : index
    %c0_23 = arith.constant 0 : index
    %27 = vector.load %arg10[%c0_22, %c0_23] : memref<1x8xf32, #tpu.memory_space<vmem>>, vector<1x8xf32>
    tpu.vector_store %arg10[%c0_22, %c0_23], %26 {strides = array<i32>} : memref<1x8xf32, #tpu.memory_space<vmem>>, vector<1x8xf32>,
    return
  }
  func.func @transform_0(%arg0: i32) -> (i32, i32) {
    %c0_i32 = arith.constant 0 : i32
    %c0_i32_0 = arith.constant 0 : i32
    return %arg0, %c0_i32 : i32, i32
  }
  func.func @transform_1(%arg0: i32) -> (i32, i32) {
    %c0_i32 = arith.constant 0 : i32
    %c0_i32_0 = arith.constant 0 : i32
    return %arg0, %c0_i32 : i32, i32
  }
  func.func @transform_2(%arg0: i32) -> (i32, i32) {
    %c0_i32 = arith.constant 0 : i32
    %c0_i32_0 = arith.constant 0 : i32
    %c0_i32_1 = arith.constant 0 : i32
    return %c0_i32, %c0_i32_0 : i32, i32
  }
  func.func @transform_3(%arg0: i32) -> (i32, i32) {
    %c0_i32 = arith.constant 0 : i32
    %c0_i32_0 = arith.constant 0 : i32
    %c0_i32_1 = arith.constant 0 : i32
    return %c0_i32, %c0_i32_0 : i32, i32
  }
  func.func @transform_4(%arg0: i32) -> (i32, i32) {
    %c0_i32 = arith.constant 0 : i32
    %c0_i32_0 = arith.constant 0 : i32
    %c0_i32_1 = arith.constant 0 : i32
    return %c0_i32, %c0_i32_0 : i32, i32
  }
  func.func @transform_5(%arg0: i32) -> (i32, i32) {
    %c0_i32 = arith.constant 0 : i32
    %c0_i32_0 = arith.constant 0 : i32
    %c0_i32_1 = arith.constant 0 : i32
    return %c0_i32, %c0_i32_0 : i32, i32
  }
  func.func @transform_6(%arg0: i32) -> (i32, i32) {
    %c0_i32 = arith.constant 0 : i32
    %c0_i32_0 = arith.constant 0 : i32
    %c0_i32_1 = arith.constant 0 : i32
    return %c0_i32, %c0_i32_0 : i32, i32
  }
  func.func @transform_7(%arg0: i32) -> (i32, i32) {
    %c0_i32 = arith.constant 0 : i32
    %c0_i32_0 = arith.constant 0 : i32
    %c0_i32_1 = arith.constant 0 : i32
    return %c0_i32, %c0_i32_0 : i32, i32
  }
  func.func @transform_8(%arg0: i32) -> (i32, i32) {
    %c0_i32 = arith.constant 0 : i32
    %c0_i32_0 = arith.constant 0 : i32
    %c0_i32_1 = arith.constant 0 : i32
    return %c0_i32, %c0_i32_0 : i32, i32
  }
  func.func @transform_9(%arg0: i32) -> (i32, i32) {
    %c0_i32 = arith.constant 0 : i32
    %c0_i32_0 = arith.constant 0 : i32
    return %c0_i32, %arg0 : i32, i32
  }
}

</mosaic_0001>

<llo_original>
// kernel: critic_forward.1
$region0: #{critic_forward.1}
  #allocation0 [shape = 'u32[]', space=smem, size = 0x4, offset = 0x4, fixed_abs, tag = 'smem constant byte address 0x4 - core index']
  #allocation1 [shape = 'u32[144,128]{1,0:T(1,128)}', space=vmem, size = 0x12000, scoped, tag = 'internal scratch']
  #allocation2 [shape = 'f32[1,1]{1,0:T(1,128)S(6)}', space=smem, size = 0x200, scoped, tag = 'scoped memory for critic_forward.1']
  %s0 = inlined_call_operand.vmem [shape: f32[8,12], index: 0, kind: input, shape index: {}]
  %s1 = inlined_call_operand.vmem [shape: f32[8,4], index: 1, kind: input, shape index: {}]
  %s2 = inlined_call_operand.vmem [shape: f32[12,32], index: 2, kind: input, shape index: {}]
  %s3 = inlined_call_operand.vmem [shape: f32[4,32], index: 3, kind: input, shape index: {}]
  %s4 = inlined_call_operand.vmem [shape: f32[1,32], index: 4, kind: input, shape index: {}]
  %s5 = inlined_call_operand.vmem [shape: f32[32,32], index: 5, kind: input, shape index: {}]
  %s6 = inlined_call_operand.vmem [shape: f32[32,1], index: 6, kind: input, shape index: {}]
  %s7 = inlined_call_operand.vmem [shape: f32[32,1], index: 7, kind: input, shape index: {}]
  %s8 = inlined_call_operand.<no memory space> [shape: f32[1,1], index: 8, kind: input, shape index: {}]
  %s9 = inlined_call_operand.hbm [shape: f32[1,8], index: 9, kind: output, shape index: {}]
  %s10 = sld [smem:[#allocation0]]
  $region46: #{critic_forward.1} parent=0
    _
  %s12 = ssub.s32 1, %s10
  %s13 = scalar_select 0, %s12, %s10
  %14 = sst [smem:[#allocation2]] %s8
  $region1: #{critic_forward.1} parent=0
    #allocation3 [shape = 'u8[512]{0}', space=vmem, size = 0x400, scoped, tag = 'output window, operand 0, single buffered']
    #allocation4 [shape = 's32[1]{0}', space=sflag, size = 0x4, scoped, tag = 'scoped memory for critic_forward.1']
    %15 = vsyncpa [#allocation4], 0
    // Predicated region
    $region2: #{critic_forward.1} parent=1 // pred_check
      _
    $region3: #{critic_forward.1} parent=1 // pred_check_branch
      %17 = sbr.rel (0) target = $region5
    $region4: #{critic_forward.1} parent=1 // pred_region
      _
    $region5: #{critic_forward.1} parent=1 // pred_fallthru
      _
    // Predicated region
    $region6: #{critic_forward.1} parent=1 // pred_check
      _
    $region7: #{critic_forward.1} parent=1 // pred_check_branch
      %19 = sbr.rel (0) target = $region9
    $region8: #{critic_forward.1} parent=1 // pred_region
      _
    $region9: #{critic_forward.1} parent=1 // pred_fallthru
      _
    // Predicated region
    $region10: #{critic_forward.1} parent=1 // pred_check
      _
    $region11: #{critic_forward.1} parent=1 // pred_check_branch
      %21 = sbr.rel (0) target = $region13
    $region12: #{critic_forward.1} parent=1 // pred_region
      _
    $region13: #{critic_forward.1} parent=1 // pred_fallthru
      _
    // Predicated region
    $region14: #{critic_forward.1} parent=1 // pred_check
      _
    $region15: #{critic_forward.1} parent=1 // pred_check_branch
      %23 = sbr.rel (0) target = $region17
    $region16: #{critic_forward.1} parent=1 // pred_region
      _
    $region17: #{critic_forward.1} parent=1 // pred_fallthru
      _
    // Predicated region
    $region18: #{critic_forward.1} parent=1 // pred_check
      _
    $region19: #{critic_forward.1} parent=1 // pred_check_branch
      %25 = sbr.rel (0) target = $region21
    $region20: #{critic_forward.1} parent=1 // pred_region
      _
    $region21: #{critic_forward.1} parent=1 // pred_fallthru
      _
    // Predicated region
    $region22: #{critic_forward.1} parent=1 // pred_check
      _
    $region23: #{critic_forward.1} parent=1 // pred_check_branch
      %27 = sbr.rel (0) target = $region25
    $region24: #{critic_forward.1} parent=1 // pred_region
      _
    $region25: #{critic_forward.1} parent=1 // pred_fallthru
      _
    // Predicated region
    $region26: #{critic_forward.1} parent=1 // pred_check
      _
    $region27: #{critic_forward.1} parent=1 // pred_check_branch
      %29 = sbr.rel (0) target = $region29
    $region28: #{critic_forward.1} parent=1 // pred_region
      _
    $region29: #{critic_forward.1} parent=1 // pred_fallthru
      _
    // Predicated region
    $region30: #{critic_forward.1} parent=1 // pred_check
      _
    $region31: #{critic_forward.1} parent=1 // pred_check_branch
      %31 = sbr.rel (0) target = $region33
    $region32: #{critic_forward.1} parent=1 // pred_region
      _
    $region33: #{critic_forward.1} parent=1 // pred_fallthru
      _
    // Predicated region
    $region34: #{critic_forward.1} parent=1 // pred_check
      _
    $region35: #{critic_forward.1} parent=1 // pred_check_branch
      %33 = sbr.rel (0) target = $region37
    $region36: #{critic_forward.1} parent=1 // pred_region
      _
    $region37: #{critic_forward.1} parent=1 // pred_fallthru
      _
    %v34 = vld [vmem:[%s0] sm:$0xff]
    %v35 = vld [vmem:[%s2] sm:$0xff]
    %v36 = vld [vmem:[%s2 + $0x8] sm:$0xf]
    %v37 = vld [vmem:[%s1] sm:$0xff]
    %v38 = vld [vmem:[%s3] sm:$0xf]
    %vm39 = vcmask 31744
    %v41 = vsel %vm39, %v37, 0
    %vm43 = vcmask 1043456
    %v45 = vsel %vm43, %v38, 0
    %47 = vmatprep.subr.mxu0 0.0
    %48 = vmatpush1.msra.mxu0 %v45
    %49 = vmatprep.subr.mxu0 0.0
    %50 = vmatpush1.msra.mxu0 0.0
    %51 = vmatprep.subr.mxu0 0.0
    %52 = vmatpush1.msra.mxu0 0.0
    %53 = vmatprep.subr.mxu0 0.0
    %54 = vmatpush1.msra.mxu0 0.0
    %55 = vmatprep.subr.mxu0 0.0
    %56 = vmatpush1.msra.mxu0 0.0
    %57 = vmatprep.subr.mxu0 0.0
    %58 = vmatpush1.msra.mxu0 0.0
    %59 = vmatprep.subr.mxu0 0.0
    %60 = vmatpush1.msra.mxu0 0.0
    %61 = vmatprep.subr.mxu0 0.0
    %62 = vmatpush1.msra.mxu0 0.0
    %63 = vmatprep.subr.mxu0 0.0
    %64 = vmatpush1.msra.mxu0 0.0
    %65 = vmatprep.subr.mxu0 0.0
    %66 = vmatpush1.msra.mxu0 0.0
    %67 = vmatprep.subr.mxu0 0.0
    %68 = vmatpush1.msra.mxu0 0.0
    %69 = vmatprep.subr.mxu0 0.0
    %70 = vmatpush1.msra.mxu0 0.0
    %71 = vmatprep.subr.mxu0 0.0
    %72 = vmatpush1.msra.mxu0 0.0
    %73 = vmatprep.subr.mxu0 0.0
    %74 = vmatpush1.msra.mxu0 0.0
    %75 = vmatprep.subr.mxu0 0.0
    %76 = vmatpush1.msra.mxu0 0.0
    %77 = vmatprep.subr.mxu0 0.0
    %78 = vmatpush1.msra.mxu0 0.0
    %79 = vmatprep.subr.mxu0 0.0
    %80 = vmatpush1.msra.mxu0 0.0
    %81 = vmatprep.subr.mxu0 0.0
    %82 = vmatpush1.msra.mxu0 0.0
    %83 = vmatprep.subr.mxu0 0.0
    %84 = vmatpush1.msra.mxu0 0.0
    %85 = vmatprep.subr.mxu0 0.0
    %86 = vmatpush1.msra.mxu0 0.0
    %87 = vmatprep.subr.mxu0 0.0
    %88 = vmatpush1.msra.mxu0 0.0
    %89 = vmatprep.subr.mxu0 0.0
    %90 = vmatpush1.msra.mxu0 0.0
    %91 = vmatprep.subr.mxu0 0.0
    %92 = vmatpush1.msra.mxu0 0.0
    %93 = vmatprep.subr.mxu0 0.0
    %94 = vmatpush1.msra.mxu0 0.0
    %95 = vmatprep.subr.mxu0 0.0
    %96 = vmatpush1.msra.mxu0 0.0
    %97 = vmatprep.subr.mxu0 0.0
    %98 = vmatpush1.msra.mxu0 0.0
    %99 = vmatprep.subr.mxu0 0.0
    %100 = vmatpush1.msra.mxu0 0.0
    %101 = vmatprep.subr.mxu0 0.0
    %102 = vmatpush1.msra.mxu0 0.0
    %103 = vmatprep.subr.mxu0 0.0
    %104 = vmatpush1.msra.mxu0 0.0
    %105 = vmatprep.subr.mxu0 0.0
    %106 = vmatpush1.msra.mxu0 0.0
    %107 = vmatprep.subr.mxu0 0.0
    %108 = vmatpush1.msra.mxu0 0.0
    %109 = vmatprep.subr.mxu0 0.0
    %110 = vmatpush1.msra.mxu0 0.0
    %111 = vmatprep.mubr.f32.mxu0 0.0
    %112 = vmatmul.mubr.f32.gmra.mrb[0].mxu0 %v41
    %v113 = vpop.f32.mrb[0].mxu0
    %v114 = vadd.f32 0.0, %v113
    %v115 = vpop.f32.mrb[0].mxu0
    %116 = vdwg.mxu0
    %vm117 = vcmask 97280
    %v119 = vsel %vm117, %v34, 0
    %v122 = vsel %vm43, %v36, 0
    %124 = vmatprep.subr.mxu0 0.0
    %125 = vmatpush1.msra.mxu0 %v35
    %126 = vmatprep.subr.mxu0 0.0
    %127 = vmatpush1.msra.mxu0 %v122
    %128 = vmatprep.subr.mxu0 0.0
    %129 = vmatpush1.msra.mxu0 0.0
    %130 = vmatprep.subr.mxu0 0.0
    %131 = vmatpush1.msra.mxu0 0.0
    %132 = vmatprep.subr.mxu0 0.0
    %133 = vmatpush1.msra.mxu0 0.0
    %134 = vmatprep.subr.mxu0 0.0
    %135 = vmatpush1.msra.mxu0 0.0
    %136 = vmatprep.subr.mxu0 0.0
    %137 = vmatpush1.msra.mxu0 0.0
    %138 = vmatprep.subr.mxu0 0.0
    %139 = vmatpush1.msra.mxu0 0.0
    %140 = vmatprep.subr.mxu0 0.0
    %141 = vmatpush1.msra.mxu0 0.0
    %142 = vmatprep.subr.mxu0 0.0
    %143 = vmatpush1.msra.mxu0 0.0
    %144 = vmatprep.subr.mxu0 0.0
    %145 = vmatpush1.msra.mxu0 0.0
    %146 = vmatprep.subr.mxu0 0.0
    %147 = vmatpush1.msra.mxu0 0.0
    %148 = vmatprep.subr.mxu0 0.0
    %149 = vmatpush1.msra.mxu0 0.0
    %150 = vmatprep.subr.mxu0 0.0
    %151 = vmatpush1.msra.mxu0 0.0
    %152 = vmatprep.subr.mxu0 0.0
    %153 = vmatpush1.msra.mxu0 0.0
    %154 = vmatprep.subr.mxu0 0.0
    %155 = vmatpush1.msra.mxu0 0.0
    %156 = vmatprep.subr.mxu0 0.0
    %157 = vmatpush1.msra.mxu0 0.0
    %158 = vmatprep.subr.mxu0 0.0
    %159 = vmatpush1.msra.mxu0 0.0
    %160 = vmatprep.subr.mxu0 0.0
    %161 = vmatpush1.msra.mxu0 0.0
    %162 = vmatprep.subr.mxu0 0.0
    %163 = vmatpush1.msra.mxu0 0.0
    %164 = vmatprep.subr.mxu0 0.0
    %165 = vmatpush1.msra.mxu0 0.0
    %166 = vmatprep.subr.mxu0 0.0
    %167 = vmatpush1.msra.mxu0 0.0
    %168 = vmatprep.subr.mxu0 0.0
    %169 = vmatpush1.msra.mxu0 0.0
    %170 = vmatprep.subr.mxu0 0.0
    %171 = vmatpush1.msra.mxu0 0.0
    %172 = vmatprep.subr.mxu0 0.0
    %173 = vmatpush1.msra.mxu0 0.0
    %174 = vmatprep.subr.mxu0 0.0
    %175 = vmatpush1.msra.mxu0 0.0
    %176 = vmatprep.subr.mxu0 0.0
    %177 = vmatpush1.msra.mxu0 0.0
    %178 = vmatprep.subr.mxu0 0.0
    %179 = vmatpush1.msra.mxu0 0.0
    %180 = vmatprep.subr.mxu0 0.0
    %181 = vmatpush1.msra.mxu0 0.0
    %182 = vmatprep.subr.mxu0 0.0
    %183 = vmatpush1.msra.mxu0 0.0
    %184 = vmatprep.subr.mxu0 0.0
    %185 = vmatpush1.msra.mxu0 0.0
    %186 = vmatprep.subr.mxu0 0.0
    %187 = vmatpush1.msra.mxu0 0.0
    %188 = vmatprep.mubr.f32.mxu0 0.0
    %189 = vmatmul.mubr.f32.gmra.mrb[0].mxu0 %v119
    %v190 = vpop.f32.mrb[0].mxu0
    %v191 = vadd.f32 %v114, %v190
    %v192 = vpop.f32.mrb[0].mxu0
    %193 = vdwg.mxu0
    %v194 = vld [vmem:[%s4] sm:$0x1]
    %v196 = vlaneseq
    %v197 = vshrl.u32 %v196, 7
    %v198 = vsub.s32 0, %v197
    %v199 = vrot.slane %v194, %v198
    %v201 = vadd.f32 %v191, %v199
    %v202 = vmax.f32 %v201, 0.0
    %v203 = vld [vmem:[%s5] sm:$0xff]
    %v204 = vld [vmem:[%s5 + $0x8] sm:$0xff]
    %v205 = vld [vmem:[%s5 + $0x10] sm:$0xff]
    %v206 = vld [vmem:[%s5 + $0x18] sm:$0xff]
    %v207 = vld [vmem:[%s6] sm:$0xff]
    %v208 = vld [vmem:[%s6 + $0x8] sm:$0xff]
    %v209 = vld [vmem:[%s6 + $0x10] sm:$0xff]
    %v210 = vld [vmem:[%s6 + $0x18] sm:$0xff]
    %212 = vset.pattern.permute.xlu0 0
    %213 = vperm.xlu0 %212, %v207
    %v214 = vpop.permute.xlu0 %213
    %217 = vset.pattern.permute.xlu0 0
    %218 = vperm.xlu0 %217, %v208
    %v219 = vpop.permute.xlu0 %218
    %222 = vset.pattern.permute.xlu0 0
    %223 = vperm.xlu0 %222, %v209
    %v224 = vpop.permute.xlu0 %223
    %227 = vset.pattern.permute.xlu0 0
    %228 = vperm.xlu0 %227, %v210
    %v229 = vpop.permute.xlu0 %228
    %vm231 = vcmask 261120
    %v233 = vsel %vm231, %v203, 0
    %v236 = vsel %vm231, %v204, 0
    %v239 = vsel %vm231, %v205, 0
    %v242 = vsel %vm231, %v206, 0
    %v245 = vsel %vm231, %v202, 0
    %247 = vmatprep.subr.mxu0 0.0
    %248 = vmatpush1.xpose.msra.mxu0 %v245
    %249 = vmatprep.subr.mxu0 0.0
    %250 = vmatpush1.xpose.msra.mxu0 0.0
    %251 = vmatprep.subr.mxu0 0.0
    %252 = vmatpush1.xpose.msra.mxu0 0.0
    %253 = vmatprep.subr.mxu0 0.0
    %254 = vmatpush1.xpose.msra.mxu0 0.0
    %255 = vmatprep.subr.mxu0 0.0
    %256 = vmatpush1.xpose.msra.mxu0 0.0
    %257 = vmatprep.subr.mxu0 0.0
    %258 = vmatpush1.xpose.msra.mxu0 0.0
    %259 = vmatprep.subr.mxu0 0.0
    %260 = vmatpush1.xpose.msra.mxu0 0.0
    %261 = vmatprep.subr.mxu0 0.0
    %262 = vmatpush1.xpose.msra.mxu0 0.0
    %263 = vmatprep.subr.mxu0 0.0
    %264 = vmatpush1.xpose.msra.mxu0 0.0
    %265 = vmatprep.subr.mxu0 0.0
    %266 = vmatpush1.xpose.msra.mxu0 0.0
    %267 = vmatprep.subr.mxu0 0.0
    %268 = vmatpush1.xpose.msra.mxu0 0.0
    %269 = vmatprep.subr.mxu0 0.0
    %270 = vmatpush1.xpose.msra.mxu0 0.0
    %271 = vmatprep.subr.mxu0 0.0
    %272 = vmatpush1.xpose.msra.mxu0 0.0
    %273 = vmatprep.subr.mxu0 0.0
    %274 = vmatpush1.xpose.msra.mxu0 0.0
    %275 = vmatprep.subr.mxu0 0.0
    %276 = vmatpush1.xpose.msra.mxu0 0.0
    %277 = vmatprep.subr.mxu0 0.0
    %278 = vmatpush1.xpose.msra.mxu0 0.0
    %279 = vmatprep.subr.mxu0 0.0
    %280 = vmatpush1.xpose.msra.mxu0 0.0
    %281 = vmatprep.subr.mxu0 0.0
    %282 = vmatpush1.xpose.msra.mxu0 0.0
    %283 = vmatprep.subr.mxu0 0.0
    %284 = vmatpush1.xpose.msra.mxu0 0.0
    %285 = vmatprep.subr.mxu0 0.0
    %286 = vmatpush1.xpose.msra.mxu0 0.0
    %287 = vmatprep.subr.mxu0 0.0
    %288 = vmatpush1.xpose.msra.mxu0 0.0
    %289 = vmatprep.subr.mxu0 0.0
    %290 = vmatpush1.xpose.msra.mxu0 0.0
    %291 = vmatprep.subr.mxu0 0.0
    %292 = vmatpush1.xpose.msra.mxu0 0.0
    %293 = vmatprep.subr.mxu0 0.0
    %294 = vmatpush1.xpose.msra.mxu0 0.0
    %295 = vmatprep.subr.mxu0 0.0
    %296 = vmatpush1.xpose.msra.mxu0 0.0
    %297 = vmatprep.subr.mxu0 0.0
    %298 = vmatpush1.xpose.msra.mxu0 0.0
    %299 = vmatprep.subr.mxu0 0.0
    %300 = vmatpush1.xpose.msra.mxu0 0.0
    %301 = vmatprep.subr.mxu0 0.0
    %302 = vmatpush1.xpose.msra.mxu0 0.0
    %303 = vmatprep.subr.mxu0 0.0
    %304 = vmatpush1.xpose.msra.mxu0 0.0
    %305 = vmatprep.subr.mxu0 0.0
    %306 = vmatpush1.xpose.msra.mxu0 0.0
    %307 = vmatprep.subr.mxu0 0.0
    %308 = vmatpush1.xpose.msra.mxu0 0.0
    %309 = vmatprep.subr.mxu0 0.0
    %310 = vmatpush1.xpose.msra.mxu0 0.0
    %311 = vmatprep.mubr.f32.mxu0 0.0
    %312 = vmatmul.mubr.f32.gmra.mrb[0].mxu0 %v233
    %v313 = vpop.f32.mrb[0].mxu0
    %v314 = vadd.f32 %v214, %v313
    %v315 = vpop.f32.mrb[0].mxu0
    %316 = vmatprep.mubr.f32.mxu0 0.0
    %317 = vmatmul.mubr.f32.gmra.mrb[0].mxu0 %v236
    %v318 = vpop.f32.mrb[0].mxu0
    %v319 = vadd.f32 %v219, %v318
    %v320 = vpop.f32.mrb[0].mxu0
    %321 = vmatprep.mubr.f32.mxu0 0.0
    %322 = vmatmul.mubr.f32.gmra.mrb[0].mxu0 %v239
    %v323 = vpop.f32.mrb[0].mxu0
    %v324 = vadd.f32 %v224, %v323
    %v325 = vpop.f32.mrb[0].mxu0
    %326 = vmatprep.mubr.f32.mxu0 0.0
    %327 = vmatmul.mubr.f32.gmra.mrb[0].mxu0 %v242
    %v328 = vpop.f32.mrb[0].mxu0
    %v329 = vadd.f32 %v229, %v328
    %v330 = vpop.f32.mrb[0].mxu0
    %331 = vdwg.mxu0
    %v332 = vmax.f32 %v314, 0.0
    %v333 = vmax.f32 %v319, 0.0
    %v334 = vmax.f32 %v324, 0.0
    %v335 = vmax.f32 %v329, 0.0
    %v336 = vld [vmem:[%s7] sm:$0xff]
    %v337 = vld [vmem:[%s7 + $0x8] sm:$0xff]
    %v338 = vld [vmem:[%s7 + $0x10] sm:$0xff]
    %v339 = vld [vmem:[%s7 + $0x18] sm:$0xff]
    %341 = vset.pattern.permute.xlu0 0
    %342 = vperm.xlu0 %341, %v336
    %v343 = vpop.permute.xlu0 %342
    %346 = vset.pattern.permute.xlu0 0
    %347 = vperm.xlu0 %346, %v337
    %v348 = vpop.permute.xlu0 %347
    %351 = vset.pattern.permute.xlu0 0
    %352 = vperm.xlu0 %351, %v338
    %v353 = vpop.permute.xlu0 %352
    %356 = vset.pattern.permute.xlu0 0
    %357 = vperm.xlu0 %356, %v339
    %v358 = vpop.permute.xlu0 %357
    %v360 = vmul.f32 %v332, %v343
    %v361 = vmul.f32 %v333, %v348
    %v362 = vmul.f32 %v334, %v353
    %v363 = vmul.f32 %v335, %v358
    %vm364 = vcmask 64512
    %v365 = vsel %vm364, %v360, 0.0
    %v366 = vsel %vm364, %v361, 0.0
    %v367 = vadd.f32 %v365, %v366
    %v368 = vsel %vm364, %v362, 0.0
    %v369 = vadd.f32 %v367, %v368
    %v370 = vsel %vm364, %v363, 0.0
    %v371 = vadd.f32 %v369, %v370
    %v372 = vrot.slane %v371, 4
    %v373 = vadd.f32 %v371, %v372
    %v374 = vrot.slane %v373, 2
    %v375 = vadd.f32 %v373, %v374
    %v376 = vrot.slane %v375, 1
    %v377 = vadd.f32 %v375, %v376
    %s378 = sld [smem:[#allocation2]]
    %v379 = vstv %s378
    %v380 = vadd.f32 %v377, %v379
    %vm381 = vcmask 57344
    %382 = vst.msk [vmem:[#allocation3] sm:$0x1] %vm381, %v380
    // Predicated region
    $region38: #{critic_forward.1} parent=1 // pred_check
      _
    $region39: #{critic_forward.1} parent=1 // pred_check_branch
      %384 = sbr.rel (0) target = $region41
    $region40: #{critic_forward.1} parent=1 // pred_region
      %s386 = ssub.s32 16, 16
      %387 = vsyncadd [#allocation4], %s386
      %s389 = sshll.u32 [#allocation3], 4
      %s390 = int_to_ptr.vmem [resolvable:$true] %s389
      %392 = dma.vmem_to_hbm [thread:$0]  %s390, 16, %s9, [#allocation4]
    $region41: #{critic_forward.1} parent=1 // pred_fallthru
      _
    // Predicated region
    $region42: #{critic_forward.1} parent=1 // pred_check
      _
    $region43: #{critic_forward.1} parent=1 // pred_check_branch
      %394 = sbr.rel (0) target = $region45
    $region44: #{critic_forward.1} parent=1 // pred_region
      %395 = dma.done [#allocation4], 16
    $region45: #{critic_forward.1} parent=1 // pred_fallthru
      _
    %396 = vsyncpa [#allocation4], 1

</llo_original>
